<compile_context>
chip_gen: v7x
topology: tpu7x:2x2x1
jax: 0.10.0
libtpu: 0.0.40
codegen_flags: <defaults>
</compile_context>

<pallas_src>
import numpy as np
import jax
import jax.numpy as jnp
from jax.experimental import pallas as pl
from jax.experimental.pallas import tpu as pltpu  # noqa: F401  (TPU backend assumed)

# ---------------- model hyper-parameters (args) ----------------
DATA_SIZE = 15          # => N = data_size + 1 = 16 tokens
LATENT_DIM = DATA_SIZE  # NumericalEmbedder tokens must match data_size
NOISE_DIM = LATENT_DIM  # required for X = X + s broadcast
HIDDEN_DIM = 32
SECTOR_EMB = 256        # attention model dim is hard-coded to 256
SECTOR_SIZE = 10
NUM_RNN_LAYER = 2
LAMBDA_VALUE = 0.7

D = 256
HEADS = 4
HEAD_DIM = D // HEADS
SCALE = HEAD_DIM ** (-0.5)              # 0.125
N_TOK = DATA_SIZE + 1
E_DIM = (DATA_SIZE + 1) * 256 + 256 * 256 + 256 + 256 + 1

# Block-diagonal head mask (1 iff lanes belong to the same 64-wide head),
# precomputed once on host as a bf16 constant.
_lane = np.arange(D) // HEAD_DIM
HEAD_MASK = jnp.asarray((_lane[:, None] == _lane[None, :]).astype(np.float32),
                        dtype=jnp.bfloat16)


# ---------------- Pallas kernel: fused pos/neg CLS attention ----------------
def attn_cls_kernel(x_ref, w_ref, mask_ref, ow_ref, ob_ref, out_ref):
    """Both {positive, negative} branches (whole batch, stacked as rows) of the
    constructed-NN attention block, CLS query only.

    x_ref   : (R, N, D) f32   R = 2*B token stacks (pos rows then neg rows)
    w_ref   : (N, D)   f32    per-token elementwise q/k/v weight (q==k==v slice of E)
    mask_ref: (D, D)   bf16   block-diagonal head mask (1 iff same 64-lane head)
    ow_ref  : (D, D)   bf16   attention output projection
    ob_ref  : (1, D)   f32    attention output bias
    out_ref : (R, D)   f32    CLS row of (proj(attn) + bias + residual)
    """
    x = x_ref[...]                            # (R, N, D)
    qkv = x * w_ref[...]                      # q == k == v (identical E slices)
    q = qkv[:, 0:1, :] * SCALE                # (R, 1, D) CLS query only

    prod = (q * qkv).astype(jnp.bfloat16)     # (R, N, D)
    r, n, d = prod.shape
    # sim[r, t, l] = per-head CLS logit, replicated across that head's 64 lanes
    sim = jax.lax.dot_general(
        prod.reshape(r * n, d), mask_ref[...],
        (((1,), (0,)), ((), ())),
        preferred_element_type=jnp.float32).reshape(r, n, d)

    sim = sim - jnp.max(sim, axis=1, keepdims=True)
    p = jnp.exp(sim)
    p = p * pl.reciprocal(jnp.sum(p, axis=1, keepdims=True), approx=True)
    # TODO(synk): nn.Dropout(0.05) on the attention map is treated as eval-mode
    # identity (no stochastic dropout in the kernel).
    attn_out = jnp.sum(p * qkv, axis=1)       # (R, D)

    o = jax.lax.dot_general(
        attn_out.astype(jnp.bfloat16), ow_ref[...],
        (((1,), (0,)), ((), ())),
        preferred_element_type=jnp.float32)   # (R, D)
    out_ref[...] = o + ob_ref[...] + x[:, 0, :]          # bias + CLS residual


def fused_cls_attention(Xpn, qkvw, out_w_bf16, out_b):
    """Xpn: (2, B, N, D) stacked pos/neg tokens -> (2, B, D) CLS outputs."""
    two, B, N, Df = Xpn.shape
    x_flat = Xpn.reshape(two * B, N, Df)      # single kernel step over all rows
    out = pl.pallas_call(
        attn_cls_kernel,
        out_shape=jax.ShapeDtypeStruct((two * B, Df), jnp.float32),
    )(x_flat, qkvw, HEAD_MASK, out_w_bf16, out_b)
    return out.reshape(two, B, Df)


# ---------------- plain-JAX glue (parameters + small layers) ----------------
def _linear_params(key, in_dim, out_dim, scale=0.1):
    k1, k2 = jax.random.split(key)
    W = jax.random.normal(k1, (out_dim, in_dim), jnp.float32) * scale
    b = jax.random.normal(k2, (out_dim,), jnp.float32) * scale
    return W, b


def _linear(x, Wb):
    W, b = Wb
    return x @ W.T + b


def init_params(key):
    ks = list(jax.random.split(key, 16))
    p = {}
    # TODO(synk): Sector_embedding is undefined in the source; modeled as a lookup table.
    p["sector_emb_table"] = jax.random.normal(
        ks[0], (SECTOR_SIZE, SECTOR_EMB), jnp.float32) * 0.1
    p["sector_projection"] = _linear_params(ks[1], SECTOR_EMB, NOISE_DIM)
    p["init_lin_h"] = _linear_params(ks[2], NOISE_DIM, LATENT_DIM)
    p["init_lin_c"] = _linear_params(ks[3], NOISE_DIM, LATENT_DIM)
    p["init_input"] = _linear_params(ks[4], NOISE_DIM, LATENT_DIM)
    # LSTM: per layer (W_ih, W_hh, b_ih, b_hh), gate order i,f,g,o
    lstm = []
    for l in range(NUM_RNN_LAYER):
        kk = jax.random.split(ks[5 + l], 4)
        lstm.append((
            jax.random.normal(kk[0], (4 * LATENT_DIM, LATENT_DIM), jnp.float32) * 0.1,
            jax.random.normal(kk[1], (4 * LATENT_DIM, LATENT_DIM), jnp.float32) * 0.1,
            jax.random.normal(kk[2], (4 * LATENT_DIM,), jnp.float32) * 0.1,
            jax.random.normal(kk[3], (4 * LATENT_DIM,), jnp.float32) * 0.1,
        ))
    p["lstm"] = lstm
    p["ltd1"] = _linear_params(ks[8], LATENT_DIM, HIDDEN_DIM)
    p["ltd2"] = _linear_params(ks[9], HIDDEN_DIM, E_DIM, scale=0.02)
    p["num_w"] = jax.random.normal(ks[10], (LATENT_DIM, SECTOR_EMB), jnp.float32)
    p["num_b"] = jax.random.normal(ks[11], (LATENT_DIM, SECTOR_EMB), jnp.float32)
    p["cls_token"] = jax.random.normal(ks[12], (1, 1, SECTOR_EMB), jnp.float32)
    return p


def simstock_forward(params, X, z, sector, perm1, perm2, lambda_value=LAMBDA_VALUE):
    # sector embedding + projection
    s_emb = params["sector_emb_table"][sector[:, 0]]             # (B, 256)
    s = _linear(s_emb, params["sector_projection"])              # (B, noise_dim)

    # hidden == None and E == None branch: init LSTM state from z (batch 1)
    h_init = jnp.tanh(_linear(z, params["init_lin_h"]))
    c_init = jnp.tanh(_linear(z, params["init_lin_c"]))
    h0 = jnp.stack([h_init] * NUM_RNN_LAYER, axis=0)             # (L, 1, latent)
    c0 = jnp.stack([c_init] * NUM_RNN_LAYER, axis=0)
    inputs = jnp.tanh(_linear(z, params["init_input"]))          # (1, latent)

    # single-step multi-layer LSTM (seq_len == 1)
    out = inputs
    h_new, c_new = [], []
    for l in range(NUM_RNN_LAYER):
        W_ih, W_hh, b_ih, b_hh = params["lstm"][l]
        gates = out @ W_ih.T + b_ih + h0[l] @ W_hh.T + b_hh
        i_g, f_g, g_g, o_g = jnp.split(gates, 4, axis=-1)
        i_g = jax.nn.sigmoid(i_g)
        f_g = jax.nn.sigmoid(f_g)
        o_g = jax.nn.sigmoid(o_g)
        g_g = jnp.tanh(g_g)
        c = f_g * c0[l] + i_g * g_g
        h = o_g * jnp.tanh(c)
        h_new.append(h)
        c_new.append(c)
        out = h
    hidden = (jnp.stack(h_new, 0), jnp.stack(c_new, 0))

    # lin_transform_down: Linear -> ReLU -> Linear
    hdn = jax.nn.relu(_linear(out, params["ltd1"]))
    E = _linear(hdn, params["ltd2"])                             # (1, E_DIM)

    # X := X + s ; numerical embedding ; cls token
    X = X + s
    X_out = X                                                    # (B, latent)
    Xe = X[:, :, None] * params["num_w"] + params["num_b"]       # (B, latent, 256)
    cls = jnp.broadcast_to(params["cls_token"], (X.shape[0], 1, SECTOR_EMB))
    Xtok = jnp.concatenate([cls, Xe], axis=1)                    # (B, N, 256)

    # nn_construction_attns (requires E batch == 1)
    base = N_TOK * 256
    qkvw = E[0, :base].reshape(N_TOK, 256)
    out_w = E[0, base:base + 256 * 256].reshape(256, 256)
    out_b = E[0, base + 256 * 256:base + 256 * 256 + 256].reshape(1, 256)
    out_m = E[0, base + 256 * 256 + 256:base + 256 * 256 + 512]  # (256,) torch (256,1)
    out_b_scalar = E[0, -1]                                      # scalar

    # augment (torch.randperm replaced by deterministic permutations)
    positive = lambda_value * Xtok + (1.0 - lambda_value) * Xtok[:, :, perm1]
    negative = (1.0 - lambda_value) * Xtok + lambda_value * Xtok[:, :, perm2]
    Xpn = jnp.stack([positive, negative], axis=0)                # (2, B, N, 256)

    out_pn = fused_cls_attention(
        Xpn, qkvw, out_w.astype(jnp.bfloat16), out_b)            # (2, B, 256)

    # final per-CLS scalar: (. , 256) @ (256, 1) + bias, hoisted out of the kernel
    finals = jnp.einsum('ibd,d->ib', out_pn, out_m) + out_b_scalar  # (2, B)
    pos_output = finals[0][:, None]                              # (B, 1)
    neg_output = finals[1][:, None]

    # TripletMarginLoss(margin=1.0, p=2), pairwise_distance eps=1e-6, broadcast
    eps = 1e-6
    d_ap = jnp.sqrt(jnp.sum((X_out - pos_output + eps) ** 2, axis=-1))
    d_an = jnp.sqrt(jnp.sum((X_out - neg_output + eps) ** 2, axis=-1))
    loss = jnp.mean(jnp.maximum(d_ap - d_an + 1.0, 0.0))

    return E, hidden, loss


simstock_forward_jit = jax.jit(simstock_forward)


if __name__ == "__main__":
    root = jax.random.PRNGKey(0)
    kp, kx, kz, ks, kp1, kp2 = jax.random.split(root, 6)

    params = init_params(kp)

    B = 2
    X = jax.random.normal(kx, (B, LATENT_DIM), jnp.float32)      # numerical features
    z = jax.random.normal(kz, (1, NOISE_DIM), jnp.float32)       # noise (batch 1, see note)
    sector = jax.random.randint(ks, (B, 1), 0, SECTOR_SIZE)      # sector ids
    perm1 = jax.random.permutation(kp1, SECTOR_EMB)
    perm2 = jax.random.permutation(kp2, SECTOR_EMB)

    E, hidden, loss = simstock_forward_jit(params, X, z, sector, perm1, perm2)
    jax.block_until_ready((E, hidden, loss))
    print("KERNEL_OK")
</pallas_src>

<mosaic_0001>
module attributes {stable_mosaic.version = 11 : i64} {
  func.func @attn_cls_kernel(%arg0: memref<4x16x256xf32, #tpu.memory_space<vmem>>, %arg1: memref<16x256xf32, #tpu.memory_space<vmem>>, %arg2: memref<256x256xbf16, #tpu.memory_space<vmem>>, %arg3: memref<256x256xbf16, #tpu.memory_space<vmem>>, %arg4: memref<1x256xf32, #tpu.memory_space<vmem>>, %arg5: memref<4x256xf32, #tpu.memory_space<vmem>>) attributes {dimension_semantics = [], scalar_prefetch = 0 : i64, scratch_operands = 0 : i64, tpu.core_type = #tpu.core_type<tc>} {
    %c0 = arith.constant 0 : index
    %c0_0 = arith.constant 0 : index
    %c0_1 = arith.constant 0 : index
    %0 = vector.load %arg0[%c0, %c0_0, %c0_1] : memref<4x16x256xf32, #tpu.memory_space<vmem>>, vector<4x16x256xf32>
    %c0_2 = arith.constant 0 : index
    %c0_3 = arith.constant 0 : index
    %1 = vector.load %arg1[%c0_2, %c0_3] : memref<16x256xf32, #tpu.memory_space<vmem>>, vector<16x256xf32>
    %2 = vector.shape_cast %1 : vector<16x256xf32> to vector<1x16x256xf32>
    %3 = vector.broadcast %2 : vector<1x16x256xf32> to vector<4x16x256xf32>
    %4 = arith.mulf %0, %3 : vector<4x16x256xf32>
    %5 = vector.extract_strided_slice %4 {offsets = [0, 0, 0], sizes = [4, 1, 256], strides = [1, 1, 1]} : vector<4x16x256xf32> to vector<4x1x256xf32>
    %cst = arith.constant 1.250000e-01 : f32
    %6 = vector.broadcast %cst : f32 to vector<4x1x256xf32>
    %7 = arith.mulf %5, %6 : vector<4x1x256xf32>
    %8 = vector.broadcast %7 : vector<4x1x256xf32> to vector<4x16x256xf32>
    %9 = arith.mulf %8, %4 : vector<4x16x256xf32>
    %10 = arith.truncf %9 : vector<4x16x256xf32> to vector<4x16x256xbf16>
    %11 = vector.shape_cast %10 : vector<4x16x256xbf16> to vector<64x256xbf16>
    %c0_4 = arith.constant 0 : index
    %c0_5 = arith.constant 0 : index
    %12 = vector.load %arg2[%c0_4, %c0_5] : memref<256x256xbf16, #tpu.memory_space<vmem>>, vector<256x256xbf16>
    %cst_6 = arith.constant dense<0.000000e+00> : vector<64x256xf32>
    %13 = tpu.matmul %11, %12, %cst_6 {dimension_numbers = #tpu.dot_dimension_numbers<[1], [0], [0], [1], [0, 0, 1, 1], [], []>} : vector<64x256xbf16>, vector<256x256xbf16>, vector<64x256xf32> -> vector<64x256xf32>
    %14 = vector.shape_cast %13 : vector<64x256xf32> to vector<4x16x256xf32>
    %cst_7 = arith.constant dense<0xFF800000> : vector<4x256xf32>
    %15 = vector.multi_reduction <maximumf>, %14, %cst_7 [1] : vector<4x16x256xf32> to vector<4x256xf32>
    %16 = vector.shape_cast %15 : vector<4x256xf32> to vector<4x1x256xf32>
    %17 = vector.broadcast %16 : vector<4x1x256xf32> to vector<4x16x256xf32>
    %18 = arith.subf %14, %17 : vector<4x16x256xf32>
    %19 = math.exp %18 : vector<4x16x256xf32>
    %cst_8 = arith.constant dense<0.000000e+00> : vector<4x256xf32>
    %20 = vector.multi_reduction <add>, %19, %cst_8 [1] : vector<4x16x256xf32> to vector<4x256xf32>
    %21 = vector.shape_cast %20 : vector<4x256xf32> to vector<4x1x256xf32>
    %22 = tpu.reciprocal %21 {approx = true} : vector<4x1x256xf32> -> vector<4x1x256xf32>
    %23 = vector.broadcast %22 : vector<4x1x256xf32> to vector<4x16x256xf32>
    %24 = arith.mulf %19, %23 : vector<4x16x256xf32>
    %25 = arith.mulf %24, %4 : vector<4x16x256xf32>
    %cst_9 = arith.constant dense<0.000000e+00> : vector<4x256xf32>
    %26 = vector.multi_reduction <add>, %25, %cst_9 [1] : vector<4x16x256xf32> to vector<4x256xf32>
    %27 = arith.truncf %26 : vector<4x256xf32> to vector<4x256xbf16>
    %c0_10 = arith.constant 0 : index
    %c0_11 = arith.constant 0 : index
    %28 = vector.load %arg3[%c0_10, %c0_11] : memref<256x256xbf16, #tpu.memory_space<vmem>>, vector<256x256xbf16>
    %cst_12 = arith.constant dense<0.000000e+00> : vector<4x256xf32>
    %29 = tpu.matmul %27, %28, %cst_12 {dimension_numbers = #tpu.dot_dimension_numbers<[1], [0], [0], [1], [0, 0, 1, 1], [], []>} : vector<4x256xbf16>, vector<256x256xbf16>, vector<4x256xf32> -> vector<4x256xf32>
    %c0_13 = arith.constant 0 : index
    %c0_14 = arith.constant 0 : index
    %30 = vector.load %arg4[%c0_13, %c0_14] : memref<1x256xf32, #tpu.memory_space<vmem>>, vector<1x256xf32>
    %31 = vector.broadcast %30 : vector<1x256xf32> to vector<4x256xf32>
    %32 = arith.addf %29, %31 : vector<4x256xf32>
    %33 = vector.extract_strided_slice %0 {offsets = [0, 0, 0], sizes = [4, 1, 256], strides = [1, 1, 1]} : vector<4x16x256xf32> to vector<4x1x256xf32>
    %34 = vector.shape_cast %33 : vector<4x1x256xf32> to vector<4x256xf32>
    %35 = arith.addf %32, %34 : vector<4x256xf32>
    %c0_15 = arith.constant 0 : index
    %c0_16 = arith.constant 0 : index
    %36 = vector.load %arg5[%c0_15, %c0_16] : memref<4x256xf32, #tpu.memory_space<vmem>>, vector<4x256xf32>
    tpu.vector_store %arg5[%c0_15, %c0_16], %35 {strides = array<i32>} : memref<4x256xf32, #tpu.memory_space<vmem>>, vector<4x256xf32>,
    return
  }
}

</mosaic_0001>

<llo_original>
// kernel: squeeze.8
$region0: #{squeeze.8}
  %s0 = inlined_call_operand.vmem [shape: f32[4096], index: 0, kind: input, shape index: {}]
  %s1 = inlined_call_operand.vmem [shape: f32[16,256], index: 1, kind: output, shape index: {}]
  %v2 = vld [vmem:[%s0] sm:$0xff]
  %3 = vst [vmem:[%s1] ss:$8 sm:$0x3] %v2
  %s4 = scalar_lea.vmem %s1, 4294967281
  %5 = vst [vmem:[%s4] ss:$8 sm:$0xc] %v2
  %s6 = scalar_lea.vmem %s1, 4294967266
  %7 = vst [vmem:[%s6] ss:$8 sm:$0x30] %v2
  %s8 = scalar_lea.vmem %s1, 4294967251
  %9 = vst [vmem:[%s8] ss:$8 sm:$0xc0] %v2
  %s10 = scalar_lea.vmem %s0, 8
  %v11 = vld [vmem:[%s10] sm:$0xff]
  %s12 = scalar_lea.vmem %s1, 4
  %13 = vst [vmem:[%s12] ss:$8 sm:$0x3] %v11
  %s14 = scalar_lea.vmem %s1, 4294967285
  %15 = vst [vmem:[%s14] ss:$8 sm:$0xc] %v11
  %s16 = scalar_lea.vmem %s1, 4294967270
  %17 = vst [vmem:[%s16] ss:$8 sm:$0x30] %v11
  %s18 = scalar_lea.vmem %s1, 4294967255
  %19 = vst [vmem:[%s18] ss:$8 sm:$0xc0] %v11
  %s20 = scalar_lea.vmem %s0, 16
  %v21 = vld [vmem:[%s20] sm:$0xff]
  %s22 = scalar_lea.vmem %s1, 16
  %23 = vst [vmem:[%s22] ss:$8 sm:$0x3] %v21
  %s24 = scalar_lea.vmem %s1, 1
  %25 = vst [vmem:[%s24] ss:$8 sm:$0xc] %v21
  %s26 = scalar_lea.vmem %s1, 4294967282
  %27 = vst [vmem:[%s26] ss:$8 sm:$0x30] %v21
  %s28 = scalar_lea.vmem %s1, 4294967267
  %29 = vst [vmem:[%s28] ss:$8 sm:$0xc0] %v21
  %s30 = scalar_lea.vmem %s0, 24
  %v31 = vld [vmem:[%s30] sm:$0xff]
  %s32 = scalar_lea.vmem %s1, 20
  %33 = vst [vmem:[%s32] ss:$8 sm:$0x3] %v31
  %s34 = scalar_lea.vmem %s1, 5
  %35 = vst [vmem:[%s34] ss:$8 sm:$0xc] %v31
  %s36 = scalar_lea.vmem %s1, 4294967286
  %37 = vst [vmem:[%s36] ss:$8 sm:$0x30] %v31
  %s38 = scalar_lea.vmem %s1, 4294967271
  %39 = vst [vmem:[%s38] ss:$8 sm:$0xc0] %v31

// kernel: simstock_forward.1
$region0: #{simstock_forward.1}
  #allocation0 [shape = 'u32[]', space=smem, size = 0x4, offset = 0x4, fixed_abs, tag = 'smem constant byte address 0x4 - core index']
  #allocation1 [shape = 'u32[144,128]{1,0:T(1,128)}', space=vmem, size = 0x12000, scoped, tag = 'internal scratch']
  %s0 = inlined_call_operand.vmem [shape: f32[4,16,256], index: 0, kind: input, shape index: {}]
  %s1 = inlined_call_operand.vmem [shape: f32[16,256], index: 1, kind: input, shape index: {}]
  %s2 = inlined_call_operand.vmem [shape: bf16[256,256], index: 2, kind: input, shape index: {}]
  %s3 = inlined_call_operand.vmem [shape: bf16[256,256], index: 3, kind: input, shape index: {}]
  %s4 = inlined_call_operand.vmem [shape: f32[1,256], index: 4, kind: input, shape index: {}]
  %s5 = inlined_call_operand.vmem [shape: f32[4,256], index: 5, kind: output, shape index: {}]
  %s6 = sld [smem:[#allocation0]]
  $region30: #{simstock_forward.1} parent=0
    _
  %s8 = ssub.s32 1, %s6
  %s9 = scalar_select 0, %s8, %s6
  // Predicated region
  $region2: #{simstock_forward.1} parent=0 // pred_check
    _
  $region3: #{simstock_forward.1} parent=0 // pred_check_branch
    %11 = sbr.rel (0) target = $region5
  $region4: #{simstock_forward.1} parent=0 // pred_region
    _
  $region5: #{simstock_forward.1} parent=0 // pred_fallthru
    _
  // Predicated region
  $region6: #{simstock_forward.1} parent=0 // pred_check
    _
  $region7: #{simstock_forward.1} parent=0 // pred_check_branch
    %13 = sbr.rel (0) target = $region9
  $region8: #{simstock_forward.1} parent=0 // pred_region
    _
  $region9: #{simstock_forward.1} parent=0 // pred_fallthru
    _
  // Predicated region
  $region10: #{simstock_forward.1} parent=0 // pred_check
    _
  $region11: #{simstock_forward.1} parent=0 // pred_check_branch
    %15 = sbr.rel (0) target = $region13
  $region12: #{simstock_forward.1} parent=0 // pred_region
    _
  $region13: #{simstock_forward.1} parent=0 // pred_fallthru
    _
  // Predicated region
  $region14: #{simstock_forward.1} parent=0 // pred_check
    _
  $region15: #{simstock_forward.1} parent=0 // pred_check_branch
    %17 = sbr.rel (0) target = $region17
  $region16: #{simstock_forward.1} parent=0 // pred_region
    _
  $region17: #{simstock_forward.1} parent=0 // pred_fallthru
    _
  // Predicated region
  $region18: #{simstock_forward.1} parent=0 // pred_check
    _
  $region19: #{simstock_forward.1} parent=0 // pred_check_branch
    %19 = sbr.rel (0) target = $region21
  $region20: #{simstock_forward.1} parent=0 // pred_region
    _
  $region21: #{simstock_forward.1} parent=0 // pred_fallthru
    _
  %v20 = vld [vmem:[%s0] sm:$0xff]
  %v21 = vld [vmem:[%s0 + $0x8] sm:$0xff]
  %v22 = vld [vmem:[%s0 + $0x10] sm:$0xff]
  %v23 = vld [vmem:[%s0 + $0x18] sm:$0xff]
  %v24 = vld [vmem:[%s0 + $0x20] sm:$0xff]
  %v25 = vld [vmem:[%s0 + $0x28] sm:$0xff]
  %v26 = vld [vmem:[%s0 + $0x30] sm:$0xff]
  %v27 = vld [vmem:[%s0 + $0x38] sm:$0xff]
  %v28 = vld [vmem:[%s0 + $0x40] sm:$0xff]
  %v29 = vld [vmem:[%s0 + $0x48] sm:$0xff]
  %v30 = vld [vmem:[%s0 + $0x50] sm:$0xff]
  %v31 = vld [vmem:[%s0 + $0x58] sm:$0xff]
  %v32 = vld [vmem:[%s0 + $0x60] sm:$0xff]
  %v33 = vld [vmem:[%s0 + $0x68] sm:$0xff]
  %v34 = vld [vmem:[%s0 + $0x70] sm:$0xff]
  %v35 = vld [vmem:[%s0 + $0x78] sm:$0xff]
  %v36 = vld [vmem:[%s1] sm:$0xff]
  %v37 = vld [vmem:[%s1 + $0x8] sm:$0xff]
  %v38 = vld [vmem:[%s1 + $0x10] sm:$0xff]
  %v39 = vld [vmem:[%s1 + $0x18] sm:$0xff]
  %v40 = vmul.f32 %v20, %v36
  %v41 = vmul.f32 %v21, %v37
  %v42 = vmul.f32 %v22, %v38
  %v43 = vmul.f32 %v23, %v39
  %v44 = vmul.f32 %v24, %v36
  %v45 = vmul.f32 %v25, %v37
  %v46 = vmul.f32 %v26, %v38
  %v47 = vmul.f32 %v27, %v39
  %v48 = vmul.f32 %v28, %v36
  %v49 = vmul.f32 %v29, %v37
  %v50 = vmul.f32 %v30, %v38
  %v51 = vmul.f32 %v31, %v39
  %v52 = vmul.f32 %v32, %v36
  %v53 = vmul.f32 %v33, %v37
  %v54 = vmul.f32 %v34, %v38
  %v55 = vmul.f32 %v35, %v39
  %v56 = vmul.f32 %v40, 0.125
  %v57 = vmul.f32 %v41, 0.125
  %v58 = vmul.f32 %v44, 0.125
  %v59 = vmul.f32 %v45, 0.125
  %v60 = vmul.f32 %v48, 0.125
  %v61 = vmul.f32 %v49, 0.125
  %v62 = vmul.f32 %v52, 0.125
  %v63 = vmul.f32 %v53, 0.125
  %v64 = vlaneseq
  %v65 = vshrl.u32 %v64, 7
  %v66 = vsub.s32 0, %v65
  %v67 = vrot.slane %v56, %v66
  %v68 = vlaneseq
  %v69 = vshrl.u32 %v68, 7
  %v70 = vsub.s32 0, %v69
  %v71 = vrot.slane %v57, %v70
  %v72 = vlaneseq
  %v73 = vshrl.u32 %v72, 7
  %v74 = vsub.s32 0, %v73
  %v75 = vrot.slane %v58, %v74
  %v76 = vlaneseq
  %v77 = vshrl.u32 %v76, 7
  %v78 = vsub.s32 0, %v77
  %v79 = vrot.slane %v59, %v78
  %v80 = vlaneseq
  %v81 = vshrl.u32 %v80, 7
  %v82 = vsub.s32 0, %v81
  %v83 = vrot.slane %v60, %v82
  %v84 = vlaneseq
  %v85 = vshrl.u32 %v84, 7
  %v86 = vsub.s32 0, %v85
  %v87 = vrot.slane %v61, %v86
  %v88 = vlaneseq
  %v89 = vshrl.u32 %v88, 7
  %v90 = vsub.s32 0, %v89
  %v91 = vrot.slane %v62, %v90
  %v92 = vlaneseq
  %v93 = vshrl.u32 %v92, 7
  %v94 = vsub.s32 0, %v93
  %v95 = vrot.slane %v63, %v94
  %v96 = vmul.f32 %v67, %v40
  %v97 = vmul.f32 %v71, %v41
  %v98 = vmul.f32 %v67, %v42
  %v99 = vmul.f32 %v71, %v43
  %v100 = vmul.f32 %v75, %v44
  %v101 = vmul.f32 %v79, %v45
  %v102 = vmul.f32 %v75, %v46
  %v103 = vmul.f32 %v79, %v47
  %v104 = vmul.f32 %v83, %v48
  %v105 = vmul.f32 %v87, %v49
  %v106 = vmul.f32 %v83, %v50
  %v107 = vmul.f32 %v87, %v51
  %v108 = vmul.f32 %v91, %v52
  %v109 = vmul.f32 %v95, %v53
  %v110 = vmul.f32 %v91, %v54
  %v111 = vmul.f32 %v95, %v55
  %v112 = vpack.c.bf16 %v98, %v96
  %v113 = vpack.c.bf16 %v99, %v97
  %v114 = vpack.c.bf16 %v102, %v100
  %v115 = vpack.c.bf16 %v103, %v101
  %v116 = vpack.c.bf16 %v106, %v104
  %v117 = vpack.c.bf16 %v107, %v105
  %v118 = vpack.c.bf16 %v110, %v108
  %v119 = vpack.c.bf16 %v111, %v109
  %v120 = vld [vmem:[%s2] sm:$0xff]
  %v121 = vld [vmem:[%s2 + $0x8] sm:$0xff]
  %v122 = vld [vmem:[%s2 + $0x10] sm:$0xff]
  %v123 = vld [vmem:[%s2 + $0x18] sm:$0xff]
  %v124 = vld [vmem:[%s2 + $0x20] sm:$0xff]
  %v125 = vld [vmem:[%s2 + $0x28] sm:$0xff]
  %v126 = vld [vmem:[%s2 + $0x30] sm:$0xff]
  %v127 = vld [vmem:[%s2 + $0x38] sm:$0xff]
  %v128 = vld [vmem:[%s2 + $0x40] sm:$0xff]
  %v129 = vld [vmem:[%s2 + $0x48] sm:$0xff]
  %v130 = vld [vmem:[%s2 + $0x50] sm:$0xff]
  %v131 = vld [vmem:[%s2 + $0x58] sm:$0xff]
  %v132 = vld [vmem:[%s2 + $0x60] sm:$0xff]
  %v133 = vld [vmem:[%s2 + $0x68] sm:$0xff]
  %v134 = vld [vmem:[%s2 + $0x70] sm:$0xff]
  %v135 = vld [vmem:[%s2 + $0x78] sm:$0xff]
  %v136 = vld [vmem:[%s2 + $0x80] sm:$0xff]
  %v137 = vld [vmem:[%s2 + $0x88] sm:$0xff]
  %v138 = vld [vmem:[%s2 + $0x90] sm:$0xff]
  %v139 = vld [vmem:[%s2 + $0x98] sm:$0xff]
  %v140 = vld [vmem:[%s2 + $0xa0] sm:$0xff]
  %v141 = vld [vmem:[%s2 + $0xa8] sm:$0xff]
  %v142 = vld [vmem:[%s2 + $0xb0] sm:$0xff]
  %v143 = vld [vmem:[%s2 + $0xb8] sm:$0xff]
  %v144 = vld [vmem:[%s2 + $0xc0] sm:$0xff]
  %v145 = vld [vmem:[%s2 + $0xc8] sm:$0xff]
  %v146 = vld [vmem:[%s2 + $0xd0] sm:$0xff]
  %v147 = vld [vmem:[%s2 + $0xd8] sm:$0xff]
  %v148 = vld [vmem:[%s2 + $0xe0] sm:$0xff]
  %v149 = vld [vmem:[%s2 + $0xe8] sm:$0xff]
  %v150 = vld [vmem:[%s2 + $0xf0] sm:$0xff]
  %v151 = vld [vmem:[%s2 + $0xf8] sm:$0xff]
  %v184 = vunpack.c.l.b16 %v120
  %v185 = vunpack.c.h.b16 %v120
  %v186 = vunpack.c.l.b16 %v121
  %v187 = vunpack.c.h.b16 %v121
  %v188 = vunpack.c.l.b16 %v122
  %v189 = vunpack.c.h.b16 %v122
  %v190 = vunpack.c.l.b16 %v123
  %v191 = vunpack.c.h.b16 %v123
  %v192 = vunpack.c.l.b16 %v124
  %v193 = vunpack.c.h.b16 %v124
  %v194 = vunpack.c.l.b16 %v125
  %v195 = vunpack.c.h.b16 %v125
  %v196 = vunpack.c.l.b16 %v126
  %v197 = vunpack.c.h.b16 %v126
  %v198 = vunpack.c.l.b16 %v127
  %v199 = vunpack.c.h.b16 %v127
  %v200 = vunpack.c.l.b16 %v128
  %v201 = vunpack.c.h.b16 %v128
  %v202 = vunpack.c.l.b16 %v129
  %v203 = vunpack.c.h.b16 %v129
  %v204 = vunpack.c.l.b16 %v130
  %v205 = vunpack.c.h.b16 %v130
  %v206 = vunpack.c.l.b16 %v131
  %v207 = vunpack.c.h.b16 %v131
  %v208 = vunpack.c.l.b16 %v132
  %v209 = vunpack.c.h.b16 %v132
  %v210 = vunpack.c.l.b16 %v133
  %v211 = vunpack.c.h.b16 %v133
  %v212 = vunpack.c.l.b16 %v134
  %v213 = vunpack.c.h.b16 %v134
  %v214 = vunpack.c.l.b16 %v135
  %v215 = vunpack.c.h.b16 %v135
  %v216 = vunpack.c.l.b16 %v136
  %v217 = vunpack.c.h.b16 %v136
  %v218 = vunpack.c.l.b16 %v137
  %v219 = vunpack.c.h.b16 %v137
  %v220 = vunpack.c.l.b16 %v138
  %v221 = vunpack.c.h.b16 %v138
  %v222 = vunpack.c.l.b16 %v139
  %v223 = vunpack.c.h.b16 %v139
  %v224 = vunpack.c.l.b16 %v140
  %v225 = vunpack.c.h.b16 %v140
  %v226 = vunpack.c.l.b16 %v141
  %v227 = vunpack.c.h.b16 %v141
  %v228 = vunpack.c.l.b16 %v142
  %v229 = vunpack.c.h.b16 %v142
  %v230 = vunpack.c.l.b16 %v143
  %v231 = vunpack.c.h.b16 %v143
  %v232 = vunpack.c.l.b16 %v144
  %v233 = vunpack.c.h.b16 %v144
  %v234 = vunpack.c.l.b16 %v145
  %v235 = vunpack.c.h.b16 %v145
  %v236 = vunpack.c.l.b16 %v146
  %v237 = vunpack.c.h.b16 %v146
  %v238 = vunpack.c.l.b16 %v147
  %v239 = vunpack.c.h.b16 %v147
  %v240 = vunpack.c.l.b16 %v148
  %v241 = vunpack.c.h.b16 %v148
  %v242 = vunpack.c.l.b16 %v149
  %v243 = vunpack.c.h.b16 %v149
  %v244 = vunpack.c.l.b16 %v150
  %v245 = vunpack.c.h.b16 %v150
  %v246 = vunpack.c.l.b16 %v151
  %v247 = vunpack.c.h.b16 %v151
  %v248 = vpack.c.b16 %v186, %v184
  %v249 = vpack.c.b16 %v187, %v185
  %v250 = vpack.c.b16 %v190, %v188
  %v251 = vpack.c.b16 %v191, %v189
  %v252 = vpack.c.b16 %v194, %v192
  %v253 = vpack.c.b16 %v195, %v193
  %v254 = vpack.c.b16 %v198, %v196
  %v255 = vpack.c.b16 %v199, %v197
  %v256 = vpack.c.b16 %v202, %v200
  %v257 = vpack.c.b16 %v203, %v201
  %v258 = vpack.c.b16 %v206, %v204
  %v259 = vpack.c.b16 %v207, %v205
  %v260 = vpack.c.b16 %v210, %v208
  %v261 = vpack.c.b16 %v211, %v209
  %v262 = vpack.c.b16 %v214, %v212
  %v263 = vpack.c.b16 %v215, %v213
  %v264 = vpack.c.b16 %v218, %v216
  %v265 = vpack.c.b16 %v219, %v217
  %v266 = vpack.c.b16 %v222, %v220
  %v267 = vpack.c.b16 %v223, %v221
  %v268 = vpack.c.b16 %v226, %v224
  %v269 = vpack.c.b16 %v227, %v225
  %v270 = vpack.c.b16 %v230, %v228
  %v271 = vpack.c.b16 %v231, %v229
  %v272 = vpack.c.b16 %v234, %v232
  %v273 = vpack.c.b16 %v235, %v233
  %v274 = vpack.c.b16 %v238, %v236
  %v275 = vpack.c.b16 %v239, %v237
  %v276 = vpack.c.b16 %v242, %v240
  %v277 = vpack.c.b16 %v243, %v241
  %v278 = vpack.c.b16 %v246, %v244
  %v279 = vpack.c.b16 %v247, %v245
  %312 = vmatprep.subr.bf16.mxu0 %v249
  %313 = vmatpush1.bf16.msra.mxu0 %v248
  %314 = vmatprep.subr.bf16.mxu0 %v251
  %315 = vmatpush1.bf16.msra.mxu0 %v250
  %316 = vmatprep.subr.bf16.mxu0 %v253
  %317 = vmatpush1.bf16.msra.mxu0 %v252
  %318 = vmatprep.subr.bf16.mxu0 %v255
  %319 = vmatpush1.bf16.msra.mxu0 %v254
  %320 = vmatprep.subr.bf16.mxu0 %v257
  %321 = vmatpush1.bf16.msra.mxu0 %v256
  %322 = vmatprep.subr.bf16.mxu0 %v259
  %323 = vmatpush1.bf16.msra.mxu0 %v258
  %324 = vmatprep.subr.bf16.mxu0 %v261
  %325 = vmatpush1.bf16.msra.mxu0 %v260
  %326 = vmatprep.subr.bf16.mxu0 %v263
  %327 = vmatpush1.bf16.msra.mxu0 %v262
  %328 = vmatprep.subr.bf16.mxu0 %v265
  %329 = vmatpush1.bf16.msra.mxu0 %v264
  %330 = vmatprep.subr.bf16.mxu0 %v267
  %331 = vmatpush1.bf16.msra.mxu0 %v266
  %332 = vmatprep.subr.bf16.mxu0 %v269
  %333 = vmatpush1.bf16.msra.mxu0 %v268
  %334 = vmatprep.subr.bf16.mxu0 %v271
  %335 = vmatpush1.bf16.msra.mxu0 %v270
  %336 = vmatprep.subr.bf16.mxu0 %v273
  %337 = vmatpush1.bf16.msra.mxu0 %v272
  %338 = vmatprep.subr.bf16.mxu0 %v275
  %339 = vmatpush1.bf16.msra.mxu0 %v274
  %340 = vmatprep.subr.bf16.mxu0 %v277
  %341 = vmatpush1.bf16.msra.mxu0 %v276
  %342 = vmatprep.subr.bf16.mxu0 %v279
  %343 = vmatpush1.bf16.msra.mxu0 %v278
  %344 = vmatprep.mubr.bf16.mxu0 %v113
  %345 = vmatmul.mubr.bf16.gmra.mrb[0].mxu0 %v112
  %v346 = vpop.f32.mrb[0].mxu0
  %v347 = vadd.f32 0.0, %v346
  %v348 = vpop.f32.mrb[0].mxu0
  %v349 = vadd.f32 0.0, %v348
  %v350 = vpop.f32.mrb[0].mxu0
  %v351 = vadd.f32 0.0, %v350
  %v352 = vpop.f32.mrb[0].mxu0
  %v353 = vadd.f32 0.0, %v352
  %354 = vmatprep.mubr.bf16.mxu0 %v115
  %355 = vmatmul.mubr.bf16.gmra.mrb[0].mxu0 %v114
  %v356 = vpop.f32.mrb[0].mxu0
  %v357 = vadd.f32 0.0, %v356
  %v358 = vpop.f32.mrb[0].mxu0
  %v359 = vadd.f32 0.0, %v358
  %v360 = vpop.f32.mrb[0].mxu0
  %v361 = vadd.f32 0.0, %v360
  %v362 = vpop.f32.mrb[0].mxu0
  %v363 = vadd.f32 0.0, %v362
  %364 = vmatprep.mubr.bf16.mxu0 %v117
  %365 = vmatmul.mubr.bf16.gmra.mrb[0].mxu0 %v116
  %v366 = vpop.f32.mrb[0].mxu0
  %v367 = vadd.f32 0.0, %v366
  %v368 = vpop.f32.mrb[0].mxu0
  %v369 = vadd.f32 0.0, %v368
  %v370 = vpop.f32.mrb[0].mxu0
  %v371 = vadd.f32 0.0, %v370
  %v372 = vpop.f32.mrb[0].mxu0
  %v373 = vadd.f32 0.0, %v372
  %374 = vmatprep.mubr.bf16.mxu0 %v119
  %375 = vmatmul.mubr.bf16.gmra.mrb[0].mxu0 %v118
  %v376 = vpop.f32.mrb[0].mxu0
  %v377 = vadd.f32 0.0, %v376
  %v378 = vpop.f32.mrb[0].mxu0
  %v379 = vadd.f32 0.0, %v378
  %v380 = vpop.f32.mrb[0].mxu0
  %v381 = vadd.f32 0.0, %v380
  %v382 = vpop.f32.mrb[0].mxu0
  %v383 = vadd.f32 0.0, %v382
  %384 = vdwg.mxu0
  %v385 = vmax.f32 %v347, %v351
  %v386 = vrot.slane %v385, 4
  %v387 = vmax.f32 %v385, %v386
  %v388 = vrot.slane %v387, 2
  %v389 = vmax.f32 %v387, %v388
  %v390 = vrot.slane %v389, 1
  %v391 = vmax.f32 %v389, %v390
  %v392 = vmax.f32 %v349, %v353
  %v393 = vrot.slane %v392, 4
  %v394 = vmax.f32 %v392, %v393
  %v395 = vrot.slane %v394, 2
  %v396 = vmax.f32 %v394, %v395
  %v397 = vrot.slane %v396, 1
  %v398 = vmax.f32 %v396, %v397
  %v399 = vmax.f32 %v357, %v361
  %v400 = vrot.slane %v399, 4
  %v401 = vmax.f32 %v399, %v400
  %v402 = vrot.slane %v401, 2
  %v403 = vmax.f32 %v401, %v402
  %v404 = vrot.slane %v403, 1
  %v405 = vmax.f32 %v403, %v404
  %v406 = vmax.f32 %v359, %v363
  %v407 = vrot.slane %v406, 4
  %v408 = vmax.f32 %v406, %v407
  %v409 = vrot.slane %v408, 2
  %v410 = vmax.f32 %v408, %v409
  %v411 = vrot.slane %v410, 1
  %v412 = vmax.f32 %v410, %v411
  %v413 = vmax.f32 %v367, %v371
  %v414 = vrot.slane %v413, 4
  %v415 = vmax.f32 %v413, %v414
  %v416 = vrot.slane %v415, 2
  %v417 = vmax.f32 %v415, %v416
  %v418 = vrot.slane %v417, 1
  %v419 = vmax.f32 %v417, %v418
  %v420 = vmax.f32 %v369, %v373
  %v421 = vrot.slane %v420, 4
  %v422 = vmax.f32 %v420, %v421
  %v423 = vrot.slane %v422, 2
  %v424 = vmax.f32 %v422, %v423
  %v425 = vrot.slane %v424, 1
  %v426 = vmax.f32 %v424, %v425
  %v427 = vmax.f32 %v377, %v381
  %v428 = vrot.slane %v427, 4
  %v429 = vmax.f32 %v427, %v428
  %v430 = vrot.slane %v429, 2
  %v431 = vmax.f32 %v429, %v430
  %v432 = vrot.slane %v431, 1
  %v433 = vmax.f32 %v431, %v432
  %v434 = vmax.f32 %v379, %v383
  %v435 = vrot.slane %v434, 4
  %v436 = vmax.f32 %v434, %v435
  %v437 = vrot.slane %v436, 2
  %v438 = vmax.f32 %v436, %v437
  %v439 = vrot.slane %v438, 1
  %v440 = vmax.f32 %v438, %v439
  %v441 = vsub.f32 %v347, %v391
  %v442 = vsub.f32 %v349, %v398
  %v443 = vsub.f32 %v351, %v391
  %v444 = vsub.f32 %v353, %v398
  %v445 = vsub.f32 %v357, %v405
  %v446 = vsub.f32 %v359, %v412
  %v447 = vsub.f32 %v361, %v405
  %v448 = vsub.f32 %v363, %v412
  %v449 = vsub.f32 %v367, %v419
  %v450 = vsub.f32 %v369, %v426
  %v451 = vsub.f32 %v371, %v419
  %v452 = vsub.f32 %v373, %v426
  %v453 = vsub.f32 %v377, %v433
  %v454 = vsub.f32 %v379, %v440
  %v455 = vsub.f32 %v381, %v433
  %v456 = vsub.f32 %v383, %v440
  %v457 = vmul.f32 %v441, 1.442695
  %v458 = vpow.pop %v457
  %v459 = vmul.f32 %v442, 1.442695
  %v460 = vpow.pop %v459
  %v461 = vmul.f32 %v443, 1.442695
  %v462 = vpow.pop %v461
  %v463 = vmul.f32 %v444, 1.442695
  %v464 = vpow.pop %v463
  %v465 = vmul.f32 %v445, 1.442695
  %v466 = vpow.pop %v465
  %v467 = vmul.f32 %v446, 1.442695
  %v468 = vpow.pop %v467
  %v469 = vmul.f32 %v447, 1.442695
  %v470 = vpow.pop %v469
  %v471 = vmul.f32 %v448, 1.442695
  %v472 = vpow.pop %v471
  %v473 = vmul.f32 %v449, 1.442695
  %v474 = vpow.pop %v473
  %v475 = vmul.f32 %v450, 1.442695
  %v476 = vpow.pop %v475
  %v477 = vmul.f32 %v451, 1.442695
  %v478 = vpow.pop %v477
  %v479 = vmul.f32 %v452, 1.442695
  %v480 = vpow.pop %v479
  %v481 = vmul.f32 %v453, 1.442695
  %v482 = vpow.pop %v481
  %v483 = vmul.f32 %v454, 1.442695
  %v484 = vpow.pop %v483
  %v485 = vmul.f32 %v455, 1.442695
  %v486 = vpow.pop %v485
  %v487 = vmul.f32 %v456, 1.442695
  %v488 = vpow.pop %v487
  %v489 = vadd.f32 %v458, %v462
  %v490 = vrot.slane %v489, 4
  %v491 = vadd.f32 %v489, %v490
  %v492 = vrot.slane %v491, 2
  %v493 = vadd.f32 %v491, %v492
  %v494 = vrot.slane %v493, 1
  %v495 = vadd.f32 %v493, %v494
  %v496 = vadd.f32 %v460, %v464
  %v497 = vrot.slane %v496, 4
  %v498 = vadd.f32 %v496, %v497
  %v499 = vrot.slane %v498, 2
  %v500 = vadd.f32 %v498, %v499
  %v501 = vrot.slane %v500, 1
  %v502 = vadd.f32 %v500, %v501
  %v503 = vadd.f32 %v466, %v470
  %v504 = vrot.slane %v503, 4
  %v505 = vadd.f32 %v503, %v504
  %v506 = vrot.slane %v505, 2
  %v507 = vadd.f32 %v505, %v506
  %v508 = vrot.slane %v507, 1
  %v509 = vadd.f32 %v507, %v508
  %v510 = vadd.f32 %v468, %v472
  %v511 = vrot.slane %v510, 4
  %v512 = vadd.f32 %v510, %v511
  %v513 = vrot.slane %v512, 2
  %v514 = vadd.f32 %v512, %v513
  %v515 = vrot.slane %v514, 1
  %v516 = vadd.f32 %v514, %v515
  %v517 = vadd.f32 %v474, %v478
  %v518 = vrot.slane %v517, 4
  %v519 = vadd.f32 %v517, %v518
  %v520 = vrot.slane %v519, 2
  %v521 = vadd.f32 %v519, %v520
  %v522 = vrot.slane %v521, 1
  %v523 = vadd.f32 %v521, %v522
  %v524 = vadd.f32 %v476, %v480
  %v525 = vrot.slane %v524, 4
  %v526 = vadd.f32 %v524, %v525
  %v527 = vrot.slane %v526, 2
  %v528 = vadd.f32 %v526, %v527
  %v529 = vrot.slane %v528, 1
  %v530 = vadd.f32 %v528, %v529
  %v531 = vadd.f32 %v482, %v486
  %v532 = vrot.slane %v531, 4
  %v533 = vadd.f32 %v531, %v532
  %v534 = vrot.slane %v533, 2
  %v535 = vadd.f32 %v533, %v534
  %v536 = vrot.slane %v535, 1
  %v537 = vadd.f32 %v535, %v536
  %v538 = vadd.f32 %v484, %v488
  %v539 = vrot.slane %v538, 4
  %v540 = vadd.f32 %v538, %v539
  %v541 = vrot.slane %v540, 2
  %v542 = vadd.f32 %v540, %v541
  %v543 = vrot.slane %v542, 1
  %v544 = vadd.f32 %v542, %v543
  %v545 = vrcp.pop %v495
  %v546 = vrcp.pop %v502
  %v547 = vrcp.pop %v509
  %v548 = vrcp.pop %v516
  %v549 = vrcp.pop %v523
  %v550 = vrcp.pop %v530
  %v551 = vrcp.pop %v537
  %v552 = vrcp.pop %v544
  %v553 = vmul.f32 %v458, %v545
  %v554 = vmul.f32 %v460, %v546
  %v555 = vmul.f32 %v462, %v545
  %v556 = vmul.f32 %v464, %v546
  %v557 = vmul.f32 %v466, %v547
  %v558 = vmul.f32 %v468, %v548
  %v559 = vmul.f32 %v470, %v547
  %v560 = vmul.f32 %v472, %v548
  %v561 = vmul.f32 %v474, %v549
  %v562 = vmul.f32 %v476, %v550
  %v563 = vmul.f32 %v478, %v549
  %v564 = vmul.f32 %v480, %v550
  %v565 = vmul.f32 %v482, %v551
  %v566 = vmul.f32 %v484, %v552
  %v567 = vmul.f32 %v486, %v551
  %v568 = vmul.f32 %v488, %v552
  %v569 = vmul.f32 %v553, %v40
  %v570 = vmul.f32 %v554, %v41
  %v571 = vmul.f32 %v555, %v42
  %v572 = vmul.f32 %v556, %v43
  %v573 = vmul.f32 %v557, %v44
  %v574 = vmul.f32 %v558, %v45
  %v575 = vmul.f32 %v559, %v46
  %v576 = vmul.f32 %v560, %v47
  %v577 = vmul.f32 %v561, %v48
  %v578 = vmul.f32 %v562, %v49
  %v579 = vmul.f32 %v563, %v50
  %v580 = vmul.f32 %v564, %v51
  %v581 = vmul.f32 %v565, %v52
  %v582 = vmul.f32 %v566, %v53
  %v583 = vmul.f32 %v567, %v54
  %v584 = vmul.f32 %v568, %v55
  %v585 = vadd.f32 %v569, %v571
  %v586 = vrot.slane %v585, 4
  %v587 = vadd.f32 %v585, %v586
  %v588 = vrot.slane %v587, 2
  %v589 = vadd.f32 %v587, %v588
  %v590 = vrot.slane %v589, 1
  %v591 = vadd.f32 %v589, %v590
  %v592 = vadd.f32 %v570, %v572
  %v593 = vrot.slane %v592, 4
  %v594 = vadd.f32 %v592, %v593
  %v595 = vrot.slane %v594, 2
  %v596 = vadd.f32 %v594, %v595
  %v597 = vrot.slane %v596, 1
  %v598 = vadd.f32 %v596, %v597
  %v599 = vadd.f32 %v573, %v575
  %v600 = vrot.slane %v599, 4
  %v601 = vadd.f32 %v599, %v600
  %v602 = vrot.slane %v601, 2
  %v603 = vadd.f32 %v601, %v602
  %v604 = vrot.slane %v603, 1
  %v605 = vadd.f32 %v603, %v604
  %v606 = vadd.f32 %v574, %v576
  %v607 = vrot.slane %v606, 4
  %v608 = vadd.f32 %v606, %v607
  %v609 = vrot.slane %v608, 2
  %v610 = vadd.f32 %v608, %v609
  %v611 = vrot.slane %v610, 1
  %v612 = vadd.f32 %v610, %v611
  %v613 = vadd.f32 %v577, %v579
  %v614 = vrot.slane %v613, 4
  %v615 = vadd.f32 %v613, %v614
  %v616 = vrot.slane %v615, 2
  %v617 = vadd.f32 %v615, %v616
  %v618 = vrot.slane %v617, 1
  %v619 = vadd.f32 %v617, %v618
  %v620 = vadd.f32 %v578, %v580
  %v621 = vrot.slane %v620, 4
  %v622 = vadd.f32 %v620, %v621
  %v623 = vrot.slane %v622, 2
  %v624 = vadd.f32 %v622, %v623
  %v625 = vrot.slane %v624, 1
  %v626 = vadd.f32 %v624, %v625
  %v627 = vadd.f32 %v581, %v583
  %v628 = vrot.slane %v627, 4
  %v629 = vadd.f32 %v627, %v628
  %v630 = vrot.slane %v629, 2
  %v631 = vadd.f32 %v629, %v630
  %v632 = vrot.slane %v631, 1
  %v633 = vadd.f32 %v631, %v632
  %v634 = vadd.f32 %v582, %v584
  %v635 = vrot.slane %v634, 4
  %v636 = vadd.f32 %v634, %v635
  %v637 = vrot.slane %v636, 2
  %v638 = vadd.f32 %v636, %v637
  %v639 = vrot.slane %v638, 1
  %v640 = vadd.f32 %v638, %v639
  %v641 = vpack.c.bf16 %v591, %v591
  %v642 = vpack.c.bf16 %v598, %v598
  %v643 = vpack.c.bf16 %v605, %v605
  %v644 = vpack.c.bf16 %v612, %v612
  %v645 = vpack.c.bf16 %v619, %v619
  %v646 = vpack.c.bf16 %v626, %v626
  %v647 = vpack.c.bf16 %v633, %v633
  %v648 = vpack.c.bf16 %v640, %v640
  %v649 = vld [vmem:[%s3] sm:$0xff]
  %v650 = vld [vmem:[%s3 + $0x8] sm:$0xff]
  %v651 = vld [vmem:[%s3 + $0x10] sm:$0xff]
  %v652 = vld [vmem:[%s3 + $0x18] sm:$0xff]
  %v653 = vld [vmem:[%s3 + $0x20] sm:$0xff]
  %v654 = vld [vmem:[%s3 + $0x28] sm:$0xff]
  %v655 = vld [vmem:[%s3 + $0x30] sm:$0xff]
  %v656 = vld [vmem:[%s3 + $0x38] sm:$0xff]
  %v657 = vld [vmem:[%s3 + $0x40] sm:$0xff]
  %v658 = vld [vmem:[%s3 + $0x48] sm:$0xff]
  %v659 = vld [vmem:[%s3 + $0x50] sm:$0xff]
  %v660 = vld [vmem:[%s3 + $0x58] sm:$0xff]
  %v661 = vld [vmem:[%s3 + $0x60] sm:$0xff]
  %v662 = vld [vmem:[%s3 + $0x68] sm:$0xff]
  %v663 = vld [vmem:[%s3 + $0x70] sm:$0xff]
  %v664 = vld [vmem:[%s3 + $0x78] sm:$0xff]
  %v665 = vld [vmem:[%s3 + $0x80] sm:$0xff]
  %v666 = vld [vmem:[%s3 + $0x88] sm:$0xff]
  %v667 = vld [vmem:[%s3 + $0x90] sm:$0xff]
  %v668 = vld [vmem:[%s3 + $0x98] sm:$0xff]
  %v669 = vld [vmem:[%s3 + $0xa0] sm:$0xff]
  %v670 = vld [vmem:[%s3 + $0xa8] sm:$0xff]
  %v671 = vld [vmem:[%s3 + $0xb0] sm:$0xff]
  %v672 = vld [vmem:[%s3 + $0xb8] sm:$0xff]
  %v673 = vld [vmem:[%s3 + $0xc0] sm:$0xff]
  %v674 = vld [vmem:[%s3 + $0xc8] sm:$0xff]
  %v675 = vld [vmem:[%s3 + $0xd0] sm:$0xff]
  %v676 = vld [vmem:[%s3 + $0xd8] sm:$0xff]
  %v677 = vld [vmem:[%s3 + $0xe0] sm:$0xff]
  %v678 = vld [vmem:[%s3 + $0xe8] sm:$0xff]
  %v679 = vld [vmem:[%s3 + $0xf0] sm:$0xff]
  %v680 = vld [vmem:[%s3 + $0xf8] sm:$0xff]
  %v681 = vld [vmem:[%s4] sm:$0x3]
  %v683 = vlaneseq
  %v684 = vshrl.u32 %v683, 7
  %v685 = vsub.s32 0, %v684
  %v686 = vrot.slane %v681, %v685
  %v687 = vlaneseq
  %v688 = vshrl.u32 %v687, 7
  %v689 = vsub.s32 1, %v688
  %v690 = vrot.slane %v681, %v689
  %v701 = vunpack.c.l.b16 %v641
  %v702 = vunpack.c.l.b16 %v642
  %v703 = vunpack.c.l.b16 %v643
  %v704 = vunpack.c.l.b16 %v644
  %v705 = vunpack.c.l.b16 %v645
  %v706 = vunpack.c.l.b16 %v646
  %v707 = vunpack.c.l.b16 %v647
  %v708 = vunpack.c.l.b16 %v648
  %vm709 = vcmask 1041409
  %v710 = vsel %vm709, %v703, %v701
  %vm711 = vcmask 1042434
  %v712 = vsel %vm711, %v705, %v710
  %vm713 = vcmask 1043459
  %v714 = vsel %vm713, %v707, %v712
  %v715 = vsel %vm709, %v704, %v702
  %v716 = vsel %vm711, %v706, %v715
  %v717 = vsel %vm713, %v708, %v716
  %v718 = vpack.c.b16 %v714, %v714
  %v719 = vpack.c.b16 %v717, %v717
  %v754 = vunpack.c.l.b16 %v649
  %v755 = vunpack.c.h.b16 %v649
  %v756 = vunpack.c.l.b16 %v650
  %v757 = vunpack.c.h.b16 %v650
  %v758 = vunpack.c.l.b16 %v651
  %v759 = vunpack.c.h.b16 %v651
  %v760 = vunpack.c.l.b16 %v652
  %v761 = vunpack.c.h.b16 %v652
  %v762 = vunpack.c.l.b16 %v653
  %v763 = vunpack.c.h.b16 %v653
  %v764 = vunpack.c.l.b16 %v654
  %v765 = vunpack.c.h.b16 %v654
  %v766 = vunpack.c.l.b16 %v655
  %v767 = vunpack.c.h.b16 %v655
  %v768 = vunpack.c.l.b16 %v656
  %v769 = vunpack.c.h.b16 %v656
  %v770 = vunpack.c.l.b16 %v657
  %v771 = vunpack.c.h.b16 %v657
  %v772 = vunpack.c.l.b16 %v658
  %v773 = vunpack.c.h.b16 %v658
  %v774 = vunpack.c.l.b16 %v659
  %v775 = vunpack.c.h.b16 %v659
  %v776 = vunpack.c.l.b16 %v660
  %v777 = vunpack.c.h.b16 %v660
  %v778 = vunpack.c.l.b16 %v661
  %v779 = vunpack.c.h.b16 %v661
  %v780 = vunpack.c.l.b16 %v662
  %v781 = vunpack.c.h.b16 %v662
  %v782 = vunpack.c.l.b16 %v663
  %v783 = vunpack.c.h.b16 %v663
  %v784 = vunpack.c.l.b16 %v664
  %v785 = vunpack.c.h.b16 %v664
  %v786 = vunpack.c.l.b16 %v665
  %v787 = vunpack.c.h.b16 %v665
  %v788 = vunpack.c.l.b16 %v666
  %v789 = vunpack.c.h.b16 %v666
  %v790 = vunpack.c.l.b16 %v667
  %v791 = vunpack.c.h.b16 %v667
  %v792 = vunpack.c.l.b16 %v668
  %v793 = vunpack.c.h.b16 %v668
  %v794 = vunpack.c.l.b16 %v669
  %v795 = vunpack.c.h.b16 %v669
  %v796 = vunpack.c.l.b16 %v670
  %v797 = vunpack.c.h.b16 %v670
  %v798 = vunpack.c.l.b16 %v671
  %v799 = vunpack.c.h.b16 %v671
  %v800 = vunpack.c.l.b16 %v672
  %v801 = vunpack.c.h.b16 %v672
  %v802 = vunpack.c.l.b16 %v673
  %v803 = vunpack.c.h.b16 %v673
  %v804 = vunpack.c.l.b16 %v674
  %v805 = vunpack.c.h.b16 %v674
  %v806 = vunpack.c.l.b16 %v675
  %v807 = vunpack.c.h.b16 %v675
  %v808 = vunpack.c.l.b16 %v676
  %v809 = vunpack.c.h.b16 %v676
  %v810 = vunpack.c.l.b16 %v677
  %v811 = vunpack.c.h.b16 %v677
  %v812 = vunpack.c.l.b16 %v678
  %v813 = vunpack.c.h.b16 %v678
  %v814 = vunpack.c.l.b16 %v679
  %v815 = vunpack.c.h.b16 %v679
  %v816 = vunpack.c.l.b16 %v680
  %v817 = vunpack.c.h.b16 %v680
  %v818 = vpack.c.b16 %v756, %v754
  %v819 = vpack.c.b16 %v757, %v755
  %v820 = vpack.c.b16 %v760, %v758
  %v821 = vpack.c.b16 %v761, %v759
  %v822 = vpack.c.b16 %v764, %v762
  %v823 = vpack.c.b16 %v765, %v763
  %v824 = vpack.c.b16 %v768, %v766
  %v825 = vpack.c.b16 %v769, %v767
  %v826 = vpack.c.b16 %v772, %v770
  %v827 = vpack.c.b16 %v773, %v771
  %v828 = vpack.c.b16 %v776, %v774
  %v829 = vpack.c.b16 %v777, %v775
  %v830 = vpack.c.b16 %v780, %v778
  %v831 = vpack.c.b16 %v781, %v779
  %v832 = vpack.c.b16 %v784, %v782
  %v833 = vpack.c.b16 %v785, %v783
  %v834 = vpack.c.b16 %v788, %v786
  %v835 = vpack.c.b16 %v789, %v787
  %v836 = vpack.c.b16 %v792, %v790
  %v837 = vpack.c.b16 %v793, %v791
  %v838 = vpack.c.b16 %v796, %v794
  %v839 = vpack.c.b16 %v797, %v795
  %v840 = vpack.c.b16 %v800, %v798
  %v841 = vpack.c.b16 %v801, %v799
  %v842 = vpack.c.b16 %v804, %v802
  %v843 = vpack.c.b16 %v805, %v803
  %v844 = vpack.c.b16 %v808, %v806
  %v845 = vpack.c.b16 %v809, %v807
  %v846 = vpack.c.b16 %v812, %v810
  %v847 = vpack.c.b16 %v813, %v811
  %v848 = vpack.c.b16 %v816, %v814
  %v849 = vpack.c.b16 %v817, %v815
  %882 = vmatprep.subr.bf16.mxu0 %v819
  %883 = vmatpush1.bf16.msra.mxu0 %v818
  %884 = vmatprep.subr.bf16.mxu0 %v821
  %885 = vmatpush1.bf16.msra.mxu0 %v820
  %886 = vmatprep.subr.bf16.mxu0 %v823
  %887 = vmatpush1.bf16.msra.mxu0 %v822
  %888 = vmatprep.subr.bf16.mxu0 %v825
  %889 = vmatpush1.bf16.msra.mxu0 %v824
  %890 = vmatprep.subr.bf16.mxu0 %v827
  %891 = vmatpush1.bf16.msra.mxu0 %v826
  %892 = vmatprep.subr.bf16.mxu0 %v829
  %893 = vmatpush1.bf16.msra.mxu0 %v828
  %894 = vmatprep.subr.bf16.mxu0 %v831
  %895 = vmatpush1.bf16.msra.mxu0 %v830
  %896 = vmatprep.subr.bf16.mxu0 %v833
  %897 = vmatpush1.bf16.msra.mxu0 %v832
  %898 = vmatprep.subr.bf16.mxu0 %v835
  %899 = vmatpush1.bf16.msra.mxu0 %v834
  %900 = vmatprep.subr.bf16.mxu0 %v837
  %901 = vmatpush1.bf16.msra.mxu0 %v836
  %902 = vmatprep.subr.bf16.mxu0 %v839
  %903 = vmatpush1.bf16.msra.mxu0 %v838
  %904 = vmatprep.subr.bf16.mxu0 %v841
  %905 = vmatpush1.bf16.msra.mxu0 %v840
  %906 = vmatprep.subr.bf16.mxu0 %v843
  %907 = vmatpush1.bf16.msra.mxu0 %v842
  %908 = vmatprep.subr.bf16.mxu0 %v845
  %909 = vmatpush1.bf16.msra.mxu0 %v844
  %910 = vmatprep.subr.bf16.mxu0 %v847
  %911 = vmatpush1.bf16.msra.mxu0 %v846
  %912 = vmatprep.subr.bf16.mxu0 %v849
  %913 = vmatpush1.bf16.msra.mxu0 %v848
  %914 = vmatprep.mubr.bf16.mxu0 %v719
  %915 = vmatmul.mubr.bf16.gmra.mrb[0].mxu0 %v718
  %v916 = vpop.f32.mrb[0].mxu0
  %v917 = vadd.f32 %v686, %v916
  %v918 = vpop.f32.mrb[0].mxu0
  %v919 = vadd.f32 %v690, %v918
  %v920 = vpop.f32.mrb[0].mxu0
  %v921 = vpop.f32.mrb[0].mxu0
  %922 = vdwg.mxu0
  %v931 = vrot.slane %v24, 7
  %v932 = vsel %vm709, %v931, %v20
  %v933 = vrot.slane %v28, 6
  %v934 = vsel %vm711, %v933, %v932
  %v935 = vrot.slane %v32, 5
  %v936 = vsel %vm713, %v935, %v934
  %v937 = vrot.slane %v25, 7
  %v938 = vsel %vm709, %v937, %v21
  %v939 = vrot.slane %v29, 6
  %v940 = vsel %vm711, %v939, %v938
  %v941 = vrot.slane %v33, 5
  %v942 = vsel %vm713, %v941, %v940
  %v945 = vadd.f32 %v917, %v936
  %v946 = vadd.f32 %v919, %v942
  %v949 = vcombine.low %v945, %v946
  %951 = vst [vmem:[%s5] sm:$0xff] %v949
  // Predicated region
  $region22: #{simstock_forward.1} parent=0 // pred_check
    _
  $region23: #{simstock_forward.1} parent=0 // pred_check_branch
    %953 = sbr.rel (0) target = $region25
  $region24: #{simstock_forward.1} parent=0 // pred_region
    _
  $region25: #{simstock_forward.1} parent=0 // pred_fallthru
    _
  // Predicated region
  $region26: #{simstock_forward.1} parent=0 // pred_check
    _
  $region27: #{simstock_forward.1} parent=0 // pred_check_branch
    %955 = sbr.rel (0) target = $region29
  $region28: #{simstock_forward.1} parent=0 // pred_region
    _
  $region29: #{simstock_forward.1} parent=0 // pred_fallthru
    _

</llo_original>
